<compile_context>
chip_gen: v7x
topology: tpu7x:2x2x1
jax: 0.10.0
libtpu: 0.0.40
codegen_flags: <defaults>
</compile_context>

<pallas_src>
import functools
import math

import jax
import jax.numpy as jnp
from jax.experimental import pallas as pl
from jax.experimental.pallas import tpu as pltpu

INPUT_CHAN = 39      # proprio (32) + object pose (7), as used in hora
HIST_LEN = 30        # temporal history length -> conv output lengths 11, 7, 3
BATCH = 2
HIDDEN = 32
PROJ_OUT = 8
OUT_PAD = 128        # lane-dense padded output width

# bf16 weight-slab row offsets (all multiples of 8 -> sublane-aligned slices)
_OFF_W1 = 0                      # channel_transform linear 2    (32, 32)
_OFF_WC0 = 32                    # conv0 taps packed             (288, 32)
_OFF_WC1 = 320                   # conv1 taps packed             (160, 32)
_OFF_WC2 = 480                   # conv2 taps packed             (160, 32)
_OFF_W0 = 640                    # channel_transform linear 1    (39, 32)
_WSLAB_ROWS = 680                # 679 used + 1 zero pad row

# f32 param-slab layout: rows [0:96] low_dim_proj weight (lane-padded to 128),
# then one bias per row.
_ROW_B0, _ROW_B1, _ROW_BC0, _ROW_BC1, _ROW_BC2, _ROW_BP = 96, 97, 98, 99, 100, 101
_PSLAB_ROWS = 104


# ---------------------------------------------------------------------------
# Fused Pallas kernel: channel_transform -> conv0/1/2 -> low_dim_proj
# ---------------------------------------------------------------------------
def _fused_kernel(x_ref, w_ref, p_ref, o_ref, *, B, T):
    H = HIDDEN
    Th = T // 2                  # rows per even/odd half          (15)
    L0 = (T - 9) // 2 + 1        # conv0 output length             (11)
    L1 = L0 - 4                  # conv1 output length             (7)
    L2 = L1 - 4                  # conv2 output length             (3)
    f32, bf16 = jnp.float32, jnp.bfloat16

    # ---- packed weights / biases: loaded once, static slab slices ----------
    w1 = w_ref[_OFF_W1:_OFF_W1 + H, :]                  # (32, 32)  bf16
    wc0 = w_ref[_OFF_WC0:_OFF_WC0 + 9 * H, :]           # (288, 32) bf16
    wc1 = w_ref[_OFF_WC1:_OFF_WC1 + 5 * H, :]           # (160, 32) bf16
    wc2 = w_ref[_OFF_WC2:_OFF_WC2 + 5 * H, :]           # (160, 32) bf16
    w0 = w_ref[_OFF_W0:_OFF_W0 + INPUT_CHAN, :]         # (39, 32)  bf16
    wp = p_ref[0:3 * H, :].astype(bf16)                 # (96, 128) bf16
    b0 = p_ref[_ROW_B0:_ROW_B0 + 1, 0:H]                # biases stay f32
    b1 = p_ref[_ROW_B1:_ROW_B1 + 1, 0:H]
    bc0 = p_ref[_ROW_BC0:_ROW_BC0 + 1, 0:H]
    bc1 = p_ref[_ROW_BC1:_ROW_BC1 + 1, 0:H]
    bc2 = p_ref[_ROW_BC2:_ROW_BC2 + 1, 0:H]
    bp = p_ref[_ROW_BP:_ROW_BP + 1, :]

    # ---- conv0 stride-2 folded into an in-kernel even/odd row reorder ------
    # (channel_transform is pointwise in time, so reordering first is free.)
    parts = []
    for b in range(B):                                   # tiny static unroll
        parts.append(x_ref[pl.ds(b * T, Th, stride=2), :])       # even steps
        parts.append(x_ref[pl.ds(b * T + 1, Th, stride=2), :])   # odd steps
    x = jnp.concatenate(parts, axis=0).astype(bf16)      # (B*T, C)

    # ---- channel_transform (Linear+ReLU x2): two batched bf16 MXU dots -----
    h = jnp.maximum(jnp.dot(x, w0, preferred_element_type=f32) + b0, 0.0)
    h = jnp.maximum(jnp.dot(h.astype(bf16), w1,
                            preferred_element_type=f32) + b1, 0.0)
    h = h.astype(bf16)                                   # (B*T, 32)

    def im2col(src, rows_per_batch, k, out_len, even_odd=False):
        """Lane-concat the k shifted slices per batch; sublane-stack batches."""
        blocks = []
        for b in range(B):
            base = b * rows_per_batch
            taps = []
            for j in range(k):
                if even_odd:     # src rows are [even half | odd half] per batch
                    off = base + (j // 2 if j % 2 == 0 else Th + j // 2)
                else:
                    off = base + j
                taps.append(src[off:off + out_len, :])
            blocks.append(jnp.concatenate(taps, axis=1))     # (out_len, k*H)
        return jnp.concatenate(blocks, axis=0)               # (B*out_len, k*H)

    # conv0: kernel 9, stride 2   -> one (B*11, 288) x (288, 32) dot
    h0 = jnp.maximum(jnp.dot(im2col(h, T, 9, L0, even_odd=True), wc0,
                             preferred_element_type=f32) + bc0, 0.0).astype(bf16)
    # conv1: kernel 5, stride 1   -> one (B*7, 160) x (160, 32) dot
    h1 = jnp.maximum(jnp.dot(im2col(h0, L0, 5, L1), wc1,
                             preferred_element_type=f32) + bc1, 0.0).astype(bf16)
    # conv2: kernel 5, stride 1   -> one (B*3, 160) x (160, 32) dot
    h2 = jnp.maximum(jnp.dot(im2col(h1, L1, 5, L2), wc2,
                             preferred_element_type=f32) + bc2, 0.0).astype(bf16)
    # low_dim_proj (torch flatten(1) order folded into wp) -> one (B,96)x(96,128)
    o_ref[...] = jnp.dot(im2col(h2, L2, L2, 1), wp,
                         preferred_element_type=f32) + bp


@jax.jit
def proprio_adapt_tconv(params, x):
    """x: (B, T, C) history; returns (B, 8) like the torch module."""
    B, T, C = x.shape
    assert T % 2 == 0
    x2d = x.reshape(B * T, C)        # free relayout; stride-2 handled in-kernel

    vmem = pl.BlockSpec(memory_space=pltpu.MemorySpace.VMEM)
    out_pad = pl.pallas_call(
        functools.partial(_fused_kernel, B=B, T=T),
        out_shape=jax.ShapeDtypeStruct((B, OUT_PAD), jnp.float32),
        in_specs=[vmem, vmem, vmem],
        out_specs=vmem,
    )(x2d, params["wslab"], params["pslab"])
    return out_pad[:, :PROJ_OUT]


# ---------------------------------------------------------------------------
# Parameters (torch-style layouts) + host-side packing into the two slabs
# ---------------------------------------------------------------------------
def make_params(key):
    ks = iter(jax.random.split(key, 12))

    def lin(fan_in, fan_out):                      # nn.Linear default init
        bound = 1.0 / math.sqrt(fan_in)
        w = jax.random.uniform(next(ks), (fan_out, fan_in), jnp.float32, -bound, bound)
        b = jax.random.uniform(next(ks), (fan_out,), jnp.float32, -bound, bound)
        return w, b

    def conv(in_c, out_c, k):                      # nn.Conv1d default init
        bound = 1.0 / math.sqrt(in_c * k)
        w = jax.random.uniform(next(ks), (out_c, in_c, k), jnp.float32, -bound, bound)
        b = jax.random.uniform(next(ks), (out_c,), jnp.float32, -bound, bound)
        return w, b

    return {
        "ct0": lin(INPUT_CHAN, HIDDEN),
        "ct1": lin(HIDDEN, HIDDEN),
        "conv0": conv(HIDDEN, HIDDEN, 9),
        "conv1": conv(HIDDEN, HIDDEN, 5),
        "conv2": conv(HIDDEN, HIDDEN, 5),
        "proj": lin(HIDDEN * 3, PROJ_OUT),
    }


def prep_params(raw):
    """Pack torch-layout weights into the two kernel slabs."""
    (w0, b0), (w1, b1) = raw["ct0"], raw["ct1"]

    def pack_conv(name):
        w, _ = raw[name]                                   # (out, in, k)
        # tap-major (k*in, out) rows match the kernel's lane-concat order
        return jnp.transpose(w, (2, 1, 0)).reshape(-1, HIDDEN)

    wslab = jnp.zeros((_WSLAB_ROWS, HIDDEN), jnp.float32)
    wslab = wslab.at[_OFF_W1:_OFF_W1 + HIDDEN].set(w1.T)
    wslab = wslab.at[_OFF_WC0:_OFF_WC0 + 9 * HIDDEN].set(pack_conv("conv0"))
    wslab = wslab.at[_OFF_WC1:_OFF_WC1 + 5 * HIDDEN].set(pack_conv("conv1"))
    wslab = wslab.at[_OFF_WC2:_OFF_WC2 + 5 * HIDDEN].set(pack_conv("conv2"))
    wslab = wslab.at[_OFF_W0:_OFF_W0 + INPUT_CHAN].set(w0.T)

    wp, bp = raw["proj"]                                   # (8, 96), (8,)
    # torch flatten(1) is channel-major (flat index = c*3 + l); reorder rows to
    # the kernel's lane order (l*32 + c) and pad output lanes to 128.
    wp_r = (wp.T.reshape(HIDDEN, 3, PROJ_OUT)
                .transpose(1, 0, 2).reshape(3 * HIDDEN, PROJ_OUT))
    pslab = jnp.zeros((_PSLAB_ROWS, OUT_PAD), jnp.float32)
    pslab = pslab.at[0:3 * HIDDEN, 0:PROJ_OUT].set(wp_r)
    pslab = pslab.at[_ROW_B0, 0:HIDDEN].set(b0)
    pslab = pslab.at[_ROW_B1, 0:HIDDEN].set(b1)
    pslab = pslab.at[_ROW_BC0, 0:HIDDEN].set(raw["conv0"][1])
    pslab = pslab.at[_ROW_BC1, 0:HIDDEN].set(raw["conv1"][1])
    pslab = pslab.at[_ROW_BC2, 0:HIDDEN].set(raw["conv2"][1])
    pslab = pslab.at[_ROW_BP, 0:PROJ_OUT].set(bp)

    return {"wslab": wslab.astype(jnp.bfloat16), "pslab": pslab}


# ---------------------------------------------------------------------------
# Pure-JAX reference (mirrors the torch module) for validation
# ---------------------------------------------------------------------------
def reference_forward(raw, x):
    hp = jax.lax.Precision.HIGHEST
    (w0, b0), (w1, b1) = raw["ct0"], raw["ct1"]
    h = jnp.maximum(jnp.einsum("btc,oc->bto", x, w0, precision=hp) + b0, 0.0)
    h = jnp.maximum(jnp.einsum("btc,oc->bto", h, w1, precision=hp) + b1, 0.0)
    h = jnp.transpose(h, (0, 2, 1))                        # (B, 32, T)
    for name, s in (("conv0", 2), ("conv1", 1), ("conv2", 1)):
        w, b = raw[name]
        h = jax.lax.conv_general_dilated(
            h, w, window_strides=(s,), padding="VALID",
            dimension_numbers=("NCH", "OIH", "NCH"), precision=hp)
        h = jnp.maximum(h + b[None, :, None], 0.0)
    flat = h.reshape(h.shape[0], -1)                       # (B, 96) channel-major
    wp, bp = raw["proj"]
    return jnp.dot(flat, wp.T, precision=hp) + bp


# ---------------------------------------------------------------------------
if __name__ == "__main__":
    key = jax.random.PRNGKey(0)
    pkey, xkey = jax.random.split(key)
    raw = make_params(pkey)
    params = prep_params(raw)

    x = jax.random.normal(xkey, (BATCH, HIST_LEN, INPUT_CHAN), jnp.float32)

    out = proprio_adapt_tconv(params, x)
    jax.block_until_ready(out)

    assert out.shape == (BATCH, PROJ_OUT)

    ref = reference_forward(raw, x)
    err = float(jnp.max(jnp.abs(out - ref)))
    # bf16 MXU operands (f32 accumulation) vs. an f32-HIGHEST reference:
    # measured error is O(1e-3); 2e-2 leaves ample headroom.
    assert err < 2e-2, f"mismatch vs reference: max abs err = {err}"

    print("KERNEL_OK")
</pallas_src>

<mosaic_0001>
module attributes {stable_mosaic.version = 11 : i64} {
  func.func @_fused_kernel(%arg0: memref<60x39xf32, #tpu.memory_space<vmem>>, %arg1: memref<680x32xbf16, #tpu.memory_space<vmem>>, %arg2: memref<104x128xf32, #tpu.memory_space<vmem>>, %arg3: memref<2x128xf32, #tpu.memory_space<vmem>>) attributes {dimension_semantics = [], scalar_prefetch = 0 : i64, scratch_operands = 0 : i64, tpu.core_type = #tpu.core_type<tc>} {
    %c0 = arith.constant 0 : index
    %c0_0 = arith.constant 0 : index
    %0 = vector.load %arg1[%c0, %c0_0] : memref<680x32xbf16, #tpu.memory_space<vmem>>, vector<32x32xbf16>
    %c32 = arith.constant 32 : index
    %c0_1 = arith.constant 0 : index
    %1 = vector.load %arg1[%c32, %c0_1] : memref<680x32xbf16, #tpu.memory_space<vmem>>, vector<288x32xbf16>
    %c320 = arith.constant 320 : index
    %c0_2 = arith.constant 0 : index
    %2 = vector.load %arg1[%c320, %c0_2] : memref<680x32xbf16, #tpu.memory_space<vmem>>, vector<160x32xbf16>
    %c480 = arith.constant 480 : index
    %c0_3 = arith.constant 0 : index
    %3 = vector.load %arg1[%c480, %c0_3] : memref<680x32xbf16, #tpu.memory_space<vmem>>, vector<160x32xbf16>
    %c640 = arith.constant 640 : index
    %c0_4 = arith.constant 0 : index
    %4 = vector.load %arg1[%c640, %c0_4] : memref<680x32xbf16, #tpu.memory_space<vmem>>, vector<39x32xbf16>
    %c0_5 = arith.constant 0 : index
    %c0_6 = arith.constant 0 : index
    %5 = vector.load %arg2[%c0_5, %c0_6] : memref<104x128xf32, #tpu.memory_space<vmem>>, vector<96x128xf32>
    %6 = arith.truncf %5 : vector<96x128xf32> to vector<96x128xbf16>
    %c96 = arith.constant 96 : index
    %c0_7 = arith.constant 0 : index
    %7 = vector.load %arg2[%c96, %c0_7] : memref<104x128xf32, #tpu.memory_space<vmem>>, vector<1x32xf32>
    %c97 = arith.constant 97 : index
    %c0_8 = arith.constant 0 : index
    %8 = vector.load %arg2[%c97, %c0_8] : memref<104x128xf32, #tpu.memory_space<vmem>>, vector<1x32xf32>
    %c98 = arith.constant 98 : index
    %c0_9 = arith.constant 0 : index
    %9 = vector.load %arg2[%c98, %c0_9] : memref<104x128xf32, #tpu.memory_space<vmem>>, vector<1x32xf32>
    %c99 = arith.constant 99 : index
    %c0_10 = arith.constant 0 : index
    %10 = vector.load %arg2[%c99, %c0_10] : memref<104x128xf32, #tpu.memory_space<vmem>>, vector<1x32xf32>
    %c100 = arith.constant 100 : index
    %c0_11 = arith.constant 0 : index
    %11 = vector.load %arg2[%c100, %c0_11] : memref<104x128xf32, #tpu.memory_space<vmem>>, vector<1x32xf32>
    %c101 = arith.constant 101 : index
    %c0_12 = arith.constant 0 : index
    %12 = vector.load %arg2[%c101, %c0_12] : memref<104x128xf32, #tpu.memory_space<vmem>>, vector<1x128xf32>
    %c0_13 = arith.constant 0 : index
    %c0_14 = arith.constant 0 : index
    %13 = tpu.strided_load %arg0[%c0_13, %c0_14] {strides = array<i32: 2, 1>} : memref<60x39xf32, #tpu.memory_space<vmem>>, vector<15x39xf32>
    %c1 = arith.constant 1 : index
    %c0_15 = arith.constant 0 : index
    %14 = tpu.strided_load %arg0[%c1, %c0_15] {strides = array<i32: 2, 1>} : memref<60x39xf32, #tpu.memory_space<vmem>>, vector<15x39xf32>
    %c30 = arith.constant 30 : index
    %c0_16 = arith.constant 0 : index
    %15 = tpu.strided_load %arg0[%c30, %c0_16] {strides = array<i32: 2, 1>} : memref<60x39xf32, #tpu.memory_space<vmem>>, vector<15x39xf32>
    %c31 = arith.constant 31 : index
    %c0_17 = arith.constant 0 : index
    %16 = tpu.strided_load %arg0[%c31, %c0_17] {strides = array<i32: 2, 1>} : memref<60x39xf32, #tpu.memory_space<vmem>>, vector<15x39xf32>
    %17 = tpu.concatenate %13, %14, %15, %16 in 0 : vector<15x39xf32>, vector<15x39xf32>, vector<15x39xf32>, vector<15x39xf32> -> vector<60x39xf32>
    %18 = arith.truncf %17 : vector<60x39xf32> to vector<60x39xbf16>
    %cst = arith.constant dense<0.000000e+00> : vector<60x32xf32>
    %19 = tpu.matmul %18, %4, %cst {dimension_numbers = #tpu.dot_dimension_numbers<[1], [0], [0], [1], [0, 0, 1, 1], [], []>} : vector<60x39xbf16>, vector<39x32xbf16>, vector<60x32xf32> -> vector<60x32xf32>
    %20 = vector.broadcast %7 : vector<1x32xf32> to vector<60x32xf32>
    %21 = arith.addf %19, %20 : vector<60x32xf32>
    %cst_18 = arith.constant 0.000000e+00 : f32
    %22 = vector.broadcast %cst_18 : f32 to vector<60x32xf32>
    %23 = arith.maximumf %21, %22 : vector<60x32xf32>
    %24 = arith.truncf %23 : vector<60x32xf32> to vector<60x32xbf16>
    %cst_19 = arith.constant dense<0.000000e+00> : vector<60x32xf32>
    %25 = tpu.matmul %24, %0, %cst_19 {dimension_numbers = #tpu.dot_dimension_numbers<[1], [0], [0], [1], [0, 0, 1, 1], [], []>} : vector<60x32xbf16>, vector<32x32xbf16>, vector<60x32xf32> -> vector<60x32xf32>
    %26 = vector.broadcast %8 : vector<1x32xf32> to vector<60x32xf32>
    %27 = arith.addf %25, %26 : vector<60x32xf32>
    %cst_20 = arith.constant 0.000000e+00 : f32
    %28 = vector.broadcast %cst_20 : f32 to vector<60x32xf32>
    %29 = arith.maximumf %27, %28 : vector<60x32xf32>
    %30 = arith.truncf %29 : vector<60x32xf32> to vector<60x32xbf16>
    %31 = vector.extract_strided_slice %30 {offsets = [0, 0], sizes = [11, 32], strides = [1, 1]} : vector<60x32xbf16> to vector<11x32xbf16>
    %32 = vector.extract_strided_slice %30 {offsets = [15, 0], sizes = [11, 32], strides = [1, 1]} : vector<60x32xbf16> to vector<11x32xbf16>
    %33 = vector.extract_strided_slice %30 {offsets = [1, 0], sizes = [11, 32], strides = [1, 1]} : vector<60x32xbf16> to vector<11x32xbf16>
    %34 = vector.extract_strided_slice %30 {offsets = [16, 0], sizes = [11, 32], strides = [1, 1]} : vector<60x32xbf16> to vector<11x32xbf16>
    %35 = vector.extract_strided_slice %30 {offsets = [2, 0], sizes = [11, 32], strides = [1, 1]} : vector<60x32xbf16> to vector<11x32xbf16>
    %36 = vector.extract_strided_slice %30 {offsets = [17, 0], sizes = [11, 32], strides = [1, 1]} : vector<60x32xbf16> to vector<11x32xbf16>
    %37 = vector.extract_strided_slice %30 {offsets = [3, 0], sizes = [11, 32], strides = [1, 1]} : vector<60x32xbf16> to vector<11x32xbf16>
    %38 = vector.extract_strided_slice %30 {offsets = [18, 0], sizes = [11, 32], strides = [1, 1]} : vector<60x32xbf16> to vector<11x32xbf16>
    %39 = vector.extract_strided_slice %30 {offsets = [4, 0], sizes = [11, 32], strides = [1, 1]} : vector<60x32xbf16> to vector<11x32xbf16>
    %40 = tpu.concatenate %31, %32, %33, %34, %35, %36, %37, %38, %39 in 1 : vector<11x32xbf16>, vector<11x32xbf16>, vector<11x32xbf16>, vector<11x32xbf16>, vector<11x32xbf16>, vector<11x32xbf16>, vector<11x32xbf16>, vector<11x32xbf16>, vector<11x32xbf16> -> vector<11x288xbf16>
    %41 = vector.extract_strided_slice %30 {offsets = [30, 0], sizes = [11, 32], strides = [1, 1]} : vector<60x32xbf16> to vector<11x32xbf16>
    %42 = vector.extract_strided_slice %30 {offsets = [45, 0], sizes = [11, 32], strides = [1, 1]} : vector<60x32xbf16> to vector<11x32xbf16>
    %43 = vector.extract_strided_slice %30 {offsets = [31, 0], sizes = [11, 32], strides = [1, 1]} : vector<60x32xbf16> to vector<11x32xbf16>
    %44 = vector.extract_strided_slice %30 {offsets = [46, 0], sizes = [11, 32], strides = [1, 1]} : vector<60x32xbf16> to vector<11x32xbf16>
    %45 = vector.extract_strided_slice %30 {offsets = [32, 0], sizes = [11, 32], strides = [1, 1]} : vector<60x32xbf16> to vector<11x32xbf16>
    %46 = vector.extract_strided_slice %30 {offsets = [47, 0], sizes = [11, 32], strides = [1, 1]} : vector<60x32xbf16> to vector<11x32xbf16>
    %47 = vector.extract_strided_slice %30 {offsets = [33, 0], sizes = [11, 32], strides = [1, 1]} : vector<60x32xbf16> to vector<11x32xbf16>
    %48 = vector.extract_strided_slice %30 {offsets = [48, 0], sizes = [11, 32], strides = [1, 1]} : vector<60x32xbf16> to vector<11x32xbf16>
    %49 = vector.extract_strided_slice %30 {offsets = [34, 0], sizes = [11, 32], strides = [1, 1]} : vector<60x32xbf16> to vector<11x32xbf16>
    %50 = tpu.concatenate %41, %42, %43, %44, %45, %46, %47, %48, %49 in 1 : vector<11x32xbf16>, vector<11x32xbf16>, vector<11x32xbf16>, vector<11x32xbf16>, vector<11x32xbf16>, vector<11x32xbf16>, vector<11x32xbf16>, vector<11x32xbf16>, vector<11x32xbf16> -> vector<11x288xbf16>
    %51 = tpu.concatenate %40, %50 in 0 : vector<11x288xbf16>, vector<11x288xbf16> -> vector<22x288xbf16>
    %cst_21 = arith.constant dense<0.000000e+00> : vector<22x32xf32>
    %52 = tpu.matmul %51, %1, %cst_21 {dimension_numbers = #tpu.dot_dimension_numbers<[1], [0], [0], [1], [0, 0, 1, 1], [], []>} : vector<22x288xbf16>, vector<288x32xbf16>, vector<22x32xf32> -> vector<22x32xf32>
    %53 = vector.broadcast %9 : vector<1x32xf32> to vector<22x32xf32>
    %54 = arith.addf %52, %53 : vector<22x32xf32>
    %cst_22 = arith.constant 0.000000e+00 : f32
    %55 = vector.broadcast %cst_22 : f32 to vector<22x32xf32>
    %56 = arith.maximumf %54, %55 : vector<22x32xf32>
    %57 = arith.truncf %56 : vector<22x32xf32> to vector<22x32xbf16>
    %58 = vector.extract_strided_slice %57 {offsets = [0, 0], sizes = [7, 32], strides = [1, 1]} : vector<22x32xbf16> to vector<7x32xbf16>
    %59 = vector.extract_strided_slice %57 {offsets = [1, 0], sizes = [7, 32], strides = [1, 1]} : vector<22x32xbf16> to vector<7x32xbf16>
    %60 = vector.extract_strided_slice %57 {offsets = [2, 0], sizes = [7, 32], strides = [1, 1]} : vector<22x32xbf16> to vector<7x32xbf16>
    %61 = vector.extract_strided_slice %57 {offsets = [3, 0], sizes = [7, 32], strides = [1, 1]} : vector<22x32xbf16> to vector<7x32xbf16>
    %62 = vector.extract_strided_slice %57 {offsets = [4, 0], sizes = [7, 32], strides = [1, 1]} : vector<22x32xbf16> to vector<7x32xbf16>
    %63 = tpu.concatenate %58, %59, %60, %61, %62 in 1 : vector<7x32xbf16>, vector<7x32xbf16>, vector<7x32xbf16>, vector<7x32xbf16>, vector<7x32xbf16> -> vector<7x160xbf16>
    %64 = vector.extract_strided_slice %57 {offsets = [11, 0], sizes = [7, 32], strides = [1, 1]} : vector<22x32xbf16> to vector<7x32xbf16>
    %65 = vector.extract_strided_slice %57 {offsets = [12, 0], sizes = [7, 32], strides = [1, 1]} : vector<22x32xbf16> to vector<7x32xbf16>
    %66 = vector.extract_strided_slice %57 {offsets = [13, 0], sizes = [7, 32], strides = [1, 1]} : vector<22x32xbf16> to vector<7x32xbf16>
    %67 = vector.extract_strided_slice %57 {offsets = [14, 0], sizes = [7, 32], strides = [1, 1]} : vector<22x32xbf16> to vector<7x32xbf16>
    %68 = vector.extract_strided_slice %57 {offsets = [15, 0], sizes = [7, 32], strides = [1, 1]} : vector<22x32xbf16> to vector<7x32xbf16>
    %69 = tpu.concatenate %64, %65, %66, %67, %68 in 1 : vector<7x32xbf16>, vector<7x32xbf16>, vector<7x32xbf16>, vector<7x32xbf16>, vector<7x32xbf16> -> vector<7x160xbf16>
    %70 = tpu.concatenate %63, %69 in 0 : vector<7x160xbf16>, vector<7x160xbf16> -> vector<14x160xbf16>
    %cst_23 = arith.constant dense<0.000000e+00> : vector<14x32xf32>
    %71 = tpu.matmul %70, %2, %cst_23 {dimension_numbers = #tpu.dot_dimension_numbers<[1], [0], [0], [1], [0, 0, 1, 1], [], []>} : vector<14x160xbf16>, vector<160x32xbf16>, vector<14x32xf32> -> vector<14x32xf32>
    %72 = vector.broadcast %10 : vector<1x32xf32> to vector<14x32xf32>
    %73 = arith.addf %71, %72 : vector<14x32xf32>
    %cst_24 = arith.constant 0.000000e+00 : f32
    %74 = vector.broadcast %cst_24 : f32 to vector<14x32xf32>
    %75 = arith.maximumf %73, %74 : vector<14x32xf32>
    %76 = arith.truncf %75 : vector<14x32xf32> to vector<14x32xbf16>
    %77 = vector.extract_strided_slice %76 {offsets = [0, 0], sizes = [3, 32], strides = [1, 1]} : vector<14x32xbf16> to vector<3x32xbf16>
    %78 = vector.extract_strided_slice %76 {offsets = [1, 0], sizes = [3, 32], strides = [1, 1]} : vector<14x32xbf16> to vector<3x32xbf16>
    %79 = vector.extract_strided_slice %76 {offsets = [2, 0], sizes = [3, 32], strides = [1, 1]} : vector<14x32xbf16> to vector<3x32xbf16>
    %80 = vector.extract_strided_slice %76 {offsets = [3, 0], sizes = [3, 32], strides = [1, 1]} : vector<14x32xbf16> to vector<3x32xbf16>
    %81 = vector.extract_strided_slice %76 {offsets = [4, 0], sizes = [3, 32], strides = [1, 1]} : vector<14x32xbf16> to vector<3x32xbf16>
    %82 = tpu.concatenate %77, %78, %79, %80, %81 in 1 : vector<3x32xbf16>, vector<3x32xbf16>, vector<3x32xbf16>, vector<3x32xbf16>, vector<3x32xbf16> -> vector<3x160xbf16>
    %83 = vector.extract_strided_slice %76 {offsets = [7, 0], sizes = [3, 32], strides = [1, 1]} : vector<14x32xbf16> to vector<3x32xbf16>
    %84 = vector.extract_strided_slice %76 {offsets = [8, 0], sizes = [3, 32], strides = [1, 1]} : vector<14x32xbf16> to vector<3x32xbf16>
    %85 = vector.extract_strided_slice %76 {offsets = [9, 0], sizes = [3, 32], strides = [1, 1]} : vector<14x32xbf16> to vector<3x32xbf16>
    %86 = vector.extract_strided_slice %76 {offsets = [10, 0], sizes = [3, 32], strides = [1, 1]} : vector<14x32xbf16> to vector<3x32xbf16>
    %87 = vector.extract_strided_slice %76 {offsets = [11, 0], sizes = [3, 32], strides = [1, 1]} : vector<14x32xbf16> to vector<3x32xbf16>
    %88 = tpu.concatenate %83, %84, %85, %86, %87 in 1 : vector<3x32xbf16>, vector<3x32xbf16>, vector<3x32xbf16>, vector<3x32xbf16>, vector<3x32xbf16> -> vector<3x160xbf16>
    %89 = tpu.concatenate %82, %88 in 0 : vector<3x160xbf16>, vector<3x160xbf16> -> vector<6x160xbf16>
    %cst_25 = arith.constant dense<0.000000e+00> : vector<6x32xf32>
    %90 = tpu.matmul %89, %3, %cst_25 {dimension_numbers = #tpu.dot_dimension_numbers<[1], [0], [0], [1], [0, 0, 1, 1], [], []>} : vector<6x160xbf16>, vector<160x32xbf16>, vector<6x32xf32> -> vector<6x32xf32>
    %91 = vector.broadcast %11 : vector<1x32xf32> to vector<6x32xf32>
    %92 = arith.addf %90, %91 : vector<6x32xf32>
    %cst_26 = arith.constant 0.000000e+00 : f32
    %93 = vector.broadcast %cst_26 : f32 to vector<6x32xf32>
    %94 = arith.maximumf %92, %93 : vector<6x32xf32>
    %95 = arith.truncf %94 : vector<6x32xf32> to vector<6x32xbf16>
    %96 = vector.extract_strided_slice %95 {offsets = [0, 0], sizes = [1, 32], strides = [1, 1]} : vector<6x32xbf16> to vector<1x32xbf16>
    %97 = vector.extract_strided_slice %95 {offsets = [1, 0], sizes = [1, 32], strides = [1, 1]} : vector<6x32xbf16> to vector<1x32xbf16>
    %98 = vector.extract_strided_slice %95 {offsets = [2, 0], sizes = [1, 32], strides = [1, 1]} : vector<6x32xbf16> to vector<1x32xbf16>
    %99 = tpu.concatenate %96, %97, %98 in 1 : vector<1x32xbf16>, vector<1x32xbf16>, vector<1x32xbf16> -> vector<1x96xbf16>
    %100 = vector.extract_strided_slice %95 {offsets = [3, 0], sizes = [1, 32], strides = [1, 1]} : vector<6x32xbf16> to vector<1x32xbf16>
    %101 = vector.extract_strided_slice %95 {offsets = [4, 0], sizes = [1, 32], strides = [1, 1]} : vector<6x32xbf16> to vector<1x32xbf16>
    %102 = vector.extract_strided_slice %95 {offsets = [5, 0], sizes = [1, 32], strides = [1, 1]} : vector<6x32xbf16> to vector<1x32xbf16>
    %103 = tpu.concatenate %100, %101, %102 in 1 : vector<1x32xbf16>, vector<1x32xbf16>, vector<1x32xbf16> -> vector<1x96xbf16>
    %104 = tpu.concatenate %99, %103 in 0 : vector<1x96xbf16>, vector<1x96xbf16> -> vector<2x96xbf16>
    %cst_27 = arith.constant dense<0.000000e+00> : vector<2x128xf32>
    %105 = tpu.matmul %104, %6, %cst_27 {dimension_numbers = #tpu.dot_dimension_numbers<[1], [0], [0], [1], [0, 0, 1, 1], [], []>} : vector<2x96xbf16>, vector<96x128xbf16>, vector<2x128xf32> -> vector<2x128xf32>
    %106 = vector.broadcast %12 : vector<1x128xf32> to vector<2x128xf32>
    %107 = arith.addf %105, %106 : vector<2x128xf32>
    %c0_28 = arith.constant 0 : index
    %c0_29 = arith.constant 0 : index
    %108 = vector.load %arg3[%c0_28, %c0_29] : memref<2x128xf32, #tpu.memory_space<vmem>>, vector<2x128xf32>
    tpu.vector_store %arg3[%c0_28, %c0_29], %107 {strides = array<i32>} : memref<2x128xf32, #tpu.memory_space<vmem>>, vector<2x128xf32>,
    return
  }
}

</mosaic_0001>

<llo_original>
// kernel: proprio_adapt_tconv.1
$region0: #{proprio_adapt_tconv.1}
  #allocation0 [shape = 'u32[]', space=smem, size = 0x4, offset = 0x4, fixed_abs, tag = 'smem constant byte address 0x4 - core index']
  #allocation1 [shape = 'u32[144,128]{1,0:T(1,128)}', space=vmem, size = 0x12000, scoped, tag = 'internal scratch']
  %s0 = inlined_call_operand.vmem [shape: f32[60,39], index: 0, kind: input, shape index: {}]
  %s1 = inlined_call_operand.vmem [shape: bf16[680,32], index: 1, kind: input, shape index: {}]
  %s2 = inlined_call_operand.vmem [shape: f32[104,128], index: 2, kind: input, shape index: {}]
  %s3 = inlined_call_operand.hbm [shape: f32[2,128], index: 3, kind: output, shape index: {}]
  %s4 = sld [smem:[#allocation0]]
  $region22: #{proprio_adapt_tconv.1} parent=0
    _
  %s6 = ssub.s32 1, %s4
  %s7 = scalar_select 0, %s6, %s4
  $region1: #{proprio_adapt_tconv.1} parent=0
    #allocation2 [shape = 'u8[1024]{0}', space=vmem, size = 0x400, scoped, tag = 'output window, operand 0, single buffered']
    #allocation3 [shape = 's32[1]{0}', space=sflag, size = 0x4, scoped, tag = 'scoped memory for proprio_adapt_tconv.1']
    %8 = vsyncpa [#allocation3], 0
    // Predicated region
    $region2: #{proprio_adapt_tconv.1} parent=1 // pred_check
      _
    $region3: #{proprio_adapt_tconv.1} parent=1 // pred_check_branch
      %10 = sbr.rel (0) target = $region5
    $region4: #{proprio_adapt_tconv.1} parent=1 // pred_region
      _
    $region5: #{proprio_adapt_tconv.1} parent=1 // pred_fallthru
      _
    // Predicated region
    $region6: #{proprio_adapt_tconv.1} parent=1 // pred_check
      _
    $region7: #{proprio_adapt_tconv.1} parent=1 // pred_check_branch
      %12 = sbr.rel (0) target = $region9
    $region8: #{proprio_adapt_tconv.1} parent=1 // pred_region
      _
    $region9: #{proprio_adapt_tconv.1} parent=1 // pred_fallthru
      _
    // Predicated region
    $region10: #{proprio_adapt_tconv.1} parent=1 // pred_check
      _
    $region11: #{proprio_adapt_tconv.1} parent=1 // pred_check_branch
      %14 = sbr.rel (0) target = $region13
    $region12: #{proprio_adapt_tconv.1} parent=1 // pred_region
      _
    $region13: #{proprio_adapt_tconv.1} parent=1 // pred_fallthru
      _
    %v16 = vld [vmem:[%s1] sm:$0xf]
    %v17 = vld [vmem:[%s1 + $0x4] sm:$0xf]
    %v18 = vld [vmem:[%s1 + $0x8] sm:$0xf]
    %v19 = vld [vmem:[%s1 + $0xc] sm:$0xf]
    %v20 = vld [vmem:[%s1 + $0x10] sm:$0xf]
    %v21 = vld [vmem:[%s1 + $0x14] sm:$0xf]
    %v22 = vld [vmem:[%s1 + $0x18] sm:$0xf]
    %v23 = vld [vmem:[%s1 + $0x1c] sm:$0xf]
    %v24 = vld [vmem:[%s1 + $0x20] sm:$0xf]
    %v25 = vld [vmem:[%s1 + $0x24] sm:$0xf]
    %v26 = vld [vmem:[%s1 + $0x28] sm:$0xf]
    %v27 = vld [vmem:[%s1 + $0x2c] sm:$0xf]
    %v28 = vld [vmem:[%s1 + $0x30] sm:$0xf]
    %v29 = vld [vmem:[%s1 + $0x34] sm:$0xf]
    %v30 = vld [vmem:[%s1 + $0x38] sm:$0xf]
    %v31 = vld [vmem:[%s1 + $0x3c] sm:$0xf]
    %v32 = vld [vmem:[%s1 + $0x40] sm:$0xf]
    %v33 = vld [vmem:[%s1 + $0x44] sm:$0xf]
    %v34 = vld [vmem:[%s1 + $0x48] sm:$0xf]
    %v35 = vld [vmem:[%s1 + $0x4c] sm:$0xf]
    %v36 = vld [vmem:[%s1 + $0x50] sm:$0xf]
    %v37 = vld [vmem:[%s1 + $0x54] sm:$0xf]
    %v38 = vld [vmem:[%s1 + $0x58] sm:$0xf]
    %v39 = vld [vmem:[%s1 + $0x5c] sm:$0xf]
    %v40 = vld [vmem:[%s1 + $0x60] sm:$0xf]
    %v41 = vld [vmem:[%s1 + $0x64] sm:$0xf]
    %v42 = vld [vmem:[%s1 + $0x68] sm:$0xf]
    %v43 = vld [vmem:[%s1 + $0x6c] sm:$0xf]
    %v44 = vld [vmem:[%s1 + $0x70] sm:$0xf]
    %v45 = vld [vmem:[%s1 + $0x74] sm:$0xf]
    %v46 = vld [vmem:[%s1 + $0x78] sm:$0xf]
    %v47 = vld [vmem:[%s1 + $0x7c] sm:$0xf]
    %v48 = vld [vmem:[%s1 + $0x80] sm:$0xf]
    %v49 = vld [vmem:[%s1 + $0x84] sm:$0xf]
    %v50 = vld [vmem:[%s1 + $0x88] sm:$0xf]
    %v51 = vld [vmem:[%s1 + $0x8c] sm:$0xf]
    %v52 = vld [vmem:[%s1 + $0x90] sm:$0xf]
    %v53 = vld [vmem:[%s1 + $0x94] sm:$0xf]
    %v54 = vld [vmem:[%s1 + $0x98] sm:$0xf]
    %v55 = vld [vmem:[%s1 + $0x9c] sm:$0xf]
    %v56 = vld [vmem:[%s1 + $0xa0] sm:$0xf]
    %v57 = vld [vmem:[%s1 + $0xa4] sm:$0xf]
    %v58 = vld [vmem:[%s1 + $0xa8] sm:$0xf]
    %v59 = vld [vmem:[%s1 + $0xac] sm:$0xf]
    %v60 = vld [vmem:[%s1 + $0xb0] sm:$0xf]
    %v61 = vld [vmem:[%s1 + $0xb4] sm:$0xf]
    %v62 = vld [vmem:[%s1 + $0xb8] sm:$0xf]
    %v63 = vld [vmem:[%s1 + $0xbc] sm:$0xf]
    %v64 = vld [vmem:[%s1 + $0xc0] sm:$0xf]
    %v65 = vld [vmem:[%s1 + $0xc4] sm:$0xf]
    %v66 = vld [vmem:[%s1 + $0xc8] sm:$0xf]
    %v67 = vld [vmem:[%s1 + $0xcc] sm:$0xf]
    %v68 = vld [vmem:[%s1 + $0xd0] sm:$0xf]
    %v69 = vld [vmem:[%s1 + $0xd4] sm:$0xf]
    %v70 = vld [vmem:[%s1 + $0xd8] sm:$0xf]
    %v71 = vld [vmem:[%s1 + $0xdc] sm:$0xf]
    %v72 = vld [vmem:[%s1 + $0xe0] sm:$0xf]
    %v73 = vld [vmem:[%s1 + $0xe4] sm:$0xf]
    %v74 = vld [vmem:[%s1 + $0xe8] sm:$0xf]
    %v75 = vld [vmem:[%s1 + $0xec] sm:$0xf]
    %v76 = vld [vmem:[%s1 + $0xf0] sm:$0xf]
    %v77 = vld [vmem:[%s1 + $0xf4] sm:$0xf]
    %v78 = vld [vmem:[%s1 + $0xf8] sm:$0xf]
    %v79 = vld [vmem:[%s1 + $0xfc] sm:$0xf]
    %v80 = vld [vmem:[%s1 + $0x100] sm:$0xf]
    %v81 = vld [vmem:[%s1 + $0x104] sm:$0xf]
    %v82 = vld [vmem:[%s1 + $0x108] sm:$0xf]
    %v83 = vld [vmem:[%s1 + $0x10c] sm:$0xf]
    %v84 = vld [vmem:[%s1 + $0x110] sm:$0xf]
    %v85 = vld [vmem:[%s1 + $0x114] sm:$0xf]
    %v86 = vld [vmem:[%s1 + $0x118] sm:$0xf]
    %v87 = vld [vmem:[%s1 + $0x11c] sm:$0xf]
    %v88 = vld [vmem:[%s1 + $0x120] sm:$0xf]
    %v89 = vld [vmem:[%s1 + $0x124] sm:$0xf]
    %v90 = vld [vmem:[%s1 + $0x128] sm:$0xf]
    %v91 = vld [vmem:[%s1 + $0x12c] sm:$0xf]
    %v92 = vld [vmem:[%s1 + $0x130] sm:$0xf]
    %v93 = vld [vmem:[%s1 + $0x134] sm:$0xf]
    %v94 = vld [vmem:[%s1 + $0x138] sm:$0xf]
    %v95 = vld [vmem:[%s1 + $0x13c] sm:$0xf]
    %v96 = vld [vmem:[%s1 + $0x140] sm:$0xf]
    %v97 = vld [vmem:[%s1 + $0x144] sm:$0xf]
    %v98 = vld [vmem:[%s1 + $0x148] sm:$0xf]
    %v99 = vld [vmem:[%s1 + $0x14c] sm:$0xf]
    %v100 = vld [vmem:[%s1 + $0x150] sm:$0xf]
    %v101 = vld [vmem:[%s2] sm:$0xff]
    %v102 = vld [vmem:[%s2 + $0x8] sm:$0xff]
    %v103 = vld [vmem:[%s2 + $0x10] sm:$0xff]
    %v104 = vld [vmem:[%s2 + $0x18] sm:$0xff]
    %v105 = vld [vmem:[%s2 + $0x20] sm:$0xff]
    %v106 = vld [vmem:[%s2 + $0x28] sm:$0xff]
    %v107 = vld [vmem:[%s2 + $0x30] sm:$0xff]
    %v108 = vld [vmem:[%s2 + $0x38] sm:$0xff]
    %v109 = vld [vmem:[%s2 + $0x40] sm:$0xff]
    %v110 = vld [vmem:[%s2 + $0x48] sm:$0xff]
    %v111 = vld [vmem:[%s2 + $0x50] sm:$0xff]
    %v112 = vld [vmem:[%s2 + $0x58] sm:$0xff]
    %v113 = vpack.c.bf16 %v102, %v101
    %v114 = vpack.c.bf16 %v104, %v103
    %v115 = vpack.c.bf16 %v106, %v105
    %v116 = vpack.c.bf16 %v108, %v107
    %v117 = vpack.c.bf16 %v110, %v109
    %v118 = vpack.c.bf16 %v112, %v111
    %v119 = vld [vmem:[%s2 + $0x60] sm:$0x1]
    %v120 = vld [vmem:[%s2 + $0x61] sm:$0x1]
    %v121 = vld [vmem:[%s2 + $0x62] sm:$0x1]
    %v122 = vld [vmem:[%s2 + $0x63] sm:$0x1]
    %v123 = vld [vmem:[%s2 + $0x64] sm:$0x1]
    %v124 = vld [vmem:[%s2 + $0x65] sm:$0x1]
    %v125 = vld [vmem:[%s0] ss:$2 sm:$0xff]
    %s126 = scalar_lea.vmem %s0, 16
    %v127 = vld [vmem:[%s126] ss:$2 sm:$0x7f]
    %s128 = scalar_lea.vmem %s0, 1
    %v129 = vld [vmem:[%s128] ss:$2 sm:$0xff]
    %s130 = scalar_lea.vmem %s0, 17
    %v131 = vld [vmem:[%s130] ss:$2 sm:$0x7f]
    %s132 = scalar_lea.vmem %s0, 30
    %v133 = vld [vmem:[%s132] ss:$2 sm:$0xff]
    %s134 = scalar_lea.vmem %s0, 46
    %v135 = vld [vmem:[%s134] ss:$2 sm:$0x7f]
    %s136 = scalar_lea.vmem %s0, 31
    %v137 = vld [vmem:[%s136] ss:$2 sm:$0xff]
    %s138 = scalar_lea.vmem %s0, 47
    %v139 = vld [vmem:[%s138] ss:$2 sm:$0x7f]
    %vm142 = vcmask 1046528
    %v143 = vrot.slane %v129, 1
    %v144 = vrot.slane %v131, 1
    %v145 = vsel %vm142, %v143, %v144
    %vm151 = vcmask 1045504
    %v152 = vrot.slane %v133, 2
    %v153 = vrot.slane %v135, 2
    %v154 = vsel %vm151, %v152, %v153
    %vm160 = vcmask 1044480
    %v161 = vrot.slane %v137, 3
    %v162 = vrot.slane %v139, 3
    %v163 = vsel %vm160, %v161, %v162
    %v167 = vsel %vm142, %v127, %v143
    %v168 = vsel %vm151, %v144, %v152
    %v169 = vsel %vm160, %v153, %v161
    %v170 = vpack.c.bf16 %v167, %v125
    %v171 = vpack.c.bf16 %v168, %v145
    %v172 = vpack.c.bf16 %v169, %v154
    %v173 = vpack.c.bf16 %v162, %v163
    %v174 = vlaneseq
    %v175 = vshrl.u32 %v174, 7
    %v176 = vsub.s32 0, %v175
    %v177 = vrot.slane %v119, %v176
    %v183 = vunpack.c.l.b16 %v96
    %v184 = vunpack.c.l.b16 %v97
    %v185 = vunpack.c.l.b16 %v98
    %v186 = vunpack.c.l.b16 %v99
    %v187 = vunpack.c.l.b16 %v100
    %v188 = vpack.c.b16 %v184, %v183
    %v189 = vpack.c.b16 %v186, %v185
    %v190 = vpack.c.b16 %v187, %v187
    %vm193 = vcmask 318464
    %v195 = vsel %vm193, %v170, 0
    %v198 = vsel %vm193, %v171, 0
    %v201 = vsel %vm193, %v172, 0
    %v204 = vsel %vm193, %v173, 0
    %vm206 = vcmask 1042432
    %vm207 = vcmask 1043456
    %v208 = vsel %vm206, 4294967295, 65535
    %v209 = vsel %vm207, %v208, 0
    %v211 = vand.u32 %v190, %v209
    %213 = vmatprep.subr.bf16.mxu0 0
    %214 = vmatpush1.bf16.msra.mxu0 %v188
    %215 = vmatprep.subr.bf16.mxu0 0
    %216 = vmatpush1.bf16.msra.mxu0 %v189
    %217 = vmatprep.subr.bf16.mxu0 0
    %218 = vmatpush1.bf16.msra.mxu0 %v211
    %219 = vmatprep.subr.bf16.mxu0 0
    %220 = vmatpush1.bf16.msra.mxu0 0
    %221 = vmatprep.subr.bf16.mxu0 0
    %222 = vmatpush1.bf16.msra.mxu0 0
    %223 = vmatprep.subr.bf16.mxu0 0
    %224 = vmatpush1.bf16.msra.mxu0 0
    %225 = vmatprep.subr.bf16.mxu0 0
    %226 = vmatpush1.bf16.msra.mxu0 0
    %227 = vmatprep.subr.bf16.mxu0 0
    %228 = vmatpush1.bf16.msra.mxu0 0
    %229 = vmatprep.subr.bf16.mxu0 0
    %230 = vmatpush1.bf16.msra.mxu0 0
    %231 = vmatprep.subr.bf16.mxu0 0
    %232 = vmatpush1.bf16.msra.mxu0 0
    %233 = vmatprep.subr.bf16.mxu0 0
    %234 = vmatpush1.bf16.msra.mxu0 0
    %235 = vmatprep.subr.bf16.mxu0 0
    %236 = vmatpush1.bf16.msra.mxu0 0
    %237 = vmatprep.subr.bf16.mxu0 0
    %238 = vmatpush1.bf16.msra.mxu0 0
    %239 = vmatprep.subr.bf16.mxu0 0
    %240 = vmatpush1.bf16.msra.mxu0 0
    %241 = vmatprep.subr.bf16.mxu0 0
    %242 = vmatpush1.bf16.msra.mxu0 0
    %243 = vmatprep.subr.bf16.mxu0 0
    %244 = vmatpush1.bf16.msra.mxu0 0
    %245 = vmatprep.mubr.bf16.mxu0 0
    %246 = vmatmul.mubr.bf16.gmra.mrb[0].mxu0 %v195
    %v247 = vpop.f32.mrb[0].mxu0
    %v248 = vadd.f32 %v177, %v247
    %v249 = vpop.f32.mrb[0].mxu0
    %v250 = vpop.f32.mrb[0].mxu0
    %v251 = vadd.f32 %v177, %v250
    %v252 = vpop.f32.mrb[0].mxu0
    %253 = vmatprep.mubr.bf16.mxu0 0
    %254 = vmatmul.mubr.bf16.gmra.mrb[0].mxu0 %v198
    %v255 = vpop.f32.mrb[0].mxu0
    %v256 = vadd.f32 %v177, %v255
    %v257 = vpop.f32.mrb[0].mxu0
    %v258 = vpop.f32.mrb[0].mxu0
    %v259 = vadd.f32 %v177, %v258
    %v260 = vpop.f32.mrb[0].mxu0
    %261 = vmatprep.mubr.bf16.mxu0 0
    %262 = vmatmul.mubr.bf16.gmra.mrb[0].mxu0 %v201
    %v263 = vpop.f32.mrb[0].mxu0
    %v264 = vadd.f32 %v177, %v263
    %v265 = vpop.f32.mrb[0].mxu0
    %v266 = vpop.f32.mrb[0].mxu0
    %v267 = vadd.f32 %v177, %v266
    %v268 = vpop.f32.mrb[0].mxu0
    %269 = vmatprep.mubr.bf16.mxu0 0
    %270 = vmatmul.mubr.bf16.gmra.mrb[0].mxu0 %v204
    %v271 = vpop.f32.mrb[0].mxu0
    %v272 = vadd.f32 %v177, %v271
    %v273 = vpop.f32.mrb[0].mxu0
    %v274 = vpop.f32.mrb[0].mxu0
    %v275 = vadd.f32 %v177, %v274
    %v276 = vpop.f32.mrb[0].mxu0
    %277 = vdwg.mxu0
    %v278 = vmax.f32 %v248, 0.0
    %v279 = vmax.f32 %v251, 0.0
    %v280 = vmax.f32 %v256, 0.0
    %v281 = vmax.f32 %v259, 0.0
    %v282 = vmax.f32 %v264, 0.0
    %v283 = vmax.f32 %v267, 0.0
    %v284 = vmax.f32 %v272, 0.0
    %v285 = vmax.f32 %v275, 0.0
    %v286 = vpack.c.bf16 %v279, %v278
    %v287 = vpack.c.bf16 %v281, %v280
    %v288 = vpack.c.bf16 %v283, %v282
    %v289 = vpack.c.bf16 %v285, %v284
    %v290 = vlaneseq
    %v291 = vshrl.u32 %v290, 7
    %v292 = vsub.s32 0, %v291
    %v293 = vrot.slane %v120, %v292
    %v298 = vunpack.c.l.b16 %v16
    %v299 = vunpack.c.l.b16 %v17
    %v300 = vunpack.c.l.b16 %v18
    %v301 = vunpack.c.l.b16 %v19
    %v302 = vpack.c.b16 %v299, %v298
    %v303 = vpack.c.b16 %v301, %v300
    %vm306 = vcmask 261120
    %v308 = vsel %vm306, %v286, 0
    %v311 = vsel %vm306, %v287, 0
    %v314 = vsel %vm306, %v288, 0
    %v317 = vsel %vm306, %v289, 0
    %319 = vmatprep.subr.bf16.mxu0 0
    %320 = vmatpush1.bf16.msra.mxu0 %v302
    %321 = vmatprep.subr.bf16.mxu0 0
    %322 = vmatpush1.bf16.msra.mxu0 %v303
    %323 = vmatprep.subr.bf16.mxu0 0
    %324 = vmatpush1.bf16.msra.mxu0 0
    %325 = vmatprep.subr.bf16.mxu0 0
    %326 = vmatpush1.bf16.msra.mxu0 0
    %327 = vmatprep.subr.bf16.mxu0 0
    %328 = vmatpush1.bf16.msra.mxu0 0
    %329 = vmatprep.subr.bf16.mxu0 0
    %330 = vmatpush1.bf16.msra.mxu0 0
    %331 = vmatprep.subr.bf16.mxu0 0
    %332 = vmatpush1.bf16.msra.mxu0 0
    %333 = vmatprep.subr.bf16.mxu0 0
    %334 = vmatpush1.bf16.msra.mxu0 0
    %335 = vmatprep.subr.bf16.mxu0 0
    %336 = vmatpush1.bf16.msra.mxu0 0
    %337 = vmatprep.subr.bf16.mxu0 0
    %338 = vmatpush1.bf16.msra.mxu0 0
    %339 = vmatprep.subr.bf16.mxu0 0
    %340 = vmatpush1.bf16.msra.mxu0 0
    %341 = vmatprep.subr.bf16.mxu0 0
    %342 = vmatpush1.bf16.msra.mxu0 0
    %343 = vmatprep.subr.bf16.mxu0 0
    %344 = vmatpush1.bf16.msra.mxu0 0
    %345 = vmatprep.subr.bf16.mxu0 0
    %346 = vmatpush1.bf16.msra.mxu0 0
    %347 = vmatprep.subr.bf16.mxu0 0
    %348 = vmatpush1.bf16.msra.mxu0 0
    %349 = vmatprep.subr.bf16.mxu0 0
    %350 = vmatpush1.bf16.msra.mxu0 0
    %351 = vmatprep.mubr.bf16.mxu0 0
    %352 = vmatmul.mubr.bf16.gmra.mrb[0].mxu0 %v308
    %v353 = vpop.f32.mrb[0].mxu0
    %v354 = vadd.f32 %v293, %v353
    %v355 = vpop.f32.mrb[0].mxu0
    %v356 = vpop.f32.mrb[0].mxu0
    %v357 = vadd.f32 %v293, %v356
    %v358 = vpop.f32.mrb[0].mxu0
    %359 = vmatprep.mubr.bf16.mxu0 0
    %360 = vmatmul.mubr.bf16.gmra.mrb[0].mxu0 %v311
    %v361 = vpop.f32.mrb[0].mxu0
    %v362 = vadd.f32 %v293, %v361
    %v363 = vpop.f32.mrb[0].mxu0
    %v364 = vpop.f32.mrb[0].mxu0
    %v365 = vadd.f32 %v293, %v364
    %v366 = vpop.f32.mrb[0].mxu0
    %367 = vmatprep.mubr.bf16.mxu0 0
    %368 = vmatmul.mubr.bf16.gmra.mrb[0].mxu0 %v314
    %v369 = vpop.f32.mrb[0].mxu0
    %v370 = vadd.f32 %v293, %v369
    %v371 = vpop.f32.mrb[0].mxu0
    %v372 = vpop.f32.mrb[0].mxu0
    %v373 = vadd.f32 %v293, %v372
    %v374 = vpop.f32.mrb[0].mxu0
    %375 = vmatprep.mubr.bf16.mxu0 0
    %376 = vmatmul.mubr.bf16.gmra.mrb[0].mxu0 %v317
    %v377 = vpop.f32.mrb[0].mxu0
    %v378 = vadd.f32 %v293, %v377
    %v379 = vpop.f32.mrb[0].mxu0
    %v380 = vpop.f32.mrb[0].mxu0
    %v381 = vadd.f32 %v293, %v380
    %v382 = vpop.f32.mrb[0].mxu0
    %383 = vdwg.mxu0
    %v384 = vmax.f32 %v354, 0.0
    %v385 = vmax.f32 %v357, 0.0
    %v386 = vmax.f32 %v362, 0.0
    %v387 = vmax.f32 %v365, 0.0
    %v388 = vmax.f32 %v370, 0.0
    %v389 = vmax.f32 %v373, 0.0
    %v390 = vmax.f32 %v378, 0.0
    %v391 = vmax.f32 %v381, 0.0
    %v392 = vpack.c.bf16 %v385, %v384
    %v393 = vpack.c.bf16 %v387, %v386
    %v394 = vpack.c.bf16 %v389, %v388
    %v395 = vpack.c.bf16 %v391, %v390
    %vm396 = vsmask.f32 256
    %v398 = vshrl.u32 %v392, 16
    %v400 = vrot.slane %v398, 7
    %v402 = vshrl.u32 %v393, 16
    %v404 = vrot.slane %v402, 7
    %v405 = vshll.u32 %v393, 16
    %v407 = vor.u32 %v404, %v405
    %v408 = vsel %vm396, %v400, %v407
    %409 = vrot.lane.b32.xlu0 %v408, 32
    %v410 = vpop.permute.xlu0 %409
    %v411 = vshll.u32 %v392, 16
    %v413 = vrot.slane %v411, 1
    %v414 = vor.u32 %v398, %v413
    %415 = vrot.lane.b32.xlu0 %v414, 64
    %v416 = vpop.permute.xlu0 %415
    %418 = vrot.lane.b32.xlu0 %v393, 96
    %v419 = vpop.permute.xlu0 %418
    %v421 = vrot.slane %v392, 1
    %v422 = vrot.slane %v405, 1
    %v423 = vor.u32 %v402, %v422
    %424 = vrot.lane.b32.xlu0 %v423, 32
    %v425 = vpop.permute.xlu0 %424
    %v426 = vrot.slane %v398, 1
    %v427 = vrot.slane %v411, 2
    %v428 = vor.u32 %v426, %v427
    %429 = vrot.lane.b32.xlu0 %v428, 64
    %v430 = vpop.permute.xlu0 %429
    %v431 = vrot.slane %v393, 1
    %432 = vrot.lane.b32.xlu0 %v431, 96
    %v433 = vpop.permute.xlu0 %432
    %v434 = vrot.slane %v392, 2
    %v437 = vsel %vm306, %v392, %v410
    %vm438 = vcmask 523264
    %v440 = vsel %vm438, %v437, %v416
    %vm441 = vcmask 785408
    %v443 = vsel %vm441, %v440, %v419
    %v447 = vsel %vm306, %v421, %v425
    %v449 = vsel %vm438, %v447, %v430
    %v451 = vsel %vm441, %v449, %v433
    %v454 = vshrl.u32 %v394, 16
    %v456 = vrot.slane %v454, 7
    %v457 = vshll.u32 %v394, 16
    %v459 = vor.u32 %v456, %v457
    %v461 = vshrl.u32 %v395, 16
    %v463 = vrot.slane %v461, 7
    %v464 = vshll.u32 %v395, 16
    %v466 = vor.u32 %v463, %v464
    %v467 = vsel %vm396, %v456, %v466
    %468 = vrot.lane.b32.xlu0 %v459, 32
    %v469 = vpop.permute.xlu0 %468
    %470 = vrot.lane.b32.xlu0 %v467, 32
    %v471 = vpop.permute.xlu0 %470
    %vm472 = vsmask.f32 7424
    %v473 = vrot.slane %v457, 1
    %v474 = vsel %vm472, %v402, %v473
    %v475 = vor.u32 %v454, %v473
    %476 = vrot.lane.b32.xlu0 %v474, 64
    %v477 = vpop.permute.xlu0 %476
    %478 = vrot.lane.b32.xlu0 %v475, 64
    %v479 = vpop.permute.xlu0 %478
    %482 = vrot.lane.b32.xlu0 %v394, 96
    %v483 = vpop.permute.xlu0 %482
    %484 = vrot.lane.b32.xlu0 %v395, 96
    %v485 = vpop.permute.xlu0 %484
    %v486 = vrot.slane %v394, 1
    %v487 = vrot.slane %v464, 1
    %v488 = vsel %vm472, %v454, %v487
    %v489 = vor.u32 %v461, %v487
    %490 = vrot.lane.b32.xlu0 %v488, 32
    %v491 = vpop.permute.xlu0 %490
    %492 = vrot.lane.b32.xlu0 %v489, 32
    %v493 = vpop.permute.xlu0 %492
    %v494 = vrot.slane %v454, 1
    %v495 = vrot.slane %v457, 2
    %v496 = vor.u32 %v494, %v495
    %497 = vrot.lane.b32.xlu0 %v496, 64
    %v498 = vpop.permute.xlu0 %497
    %v499 = vrot.slane %v395, 1
    %500 = vrot.lane.b32.xlu0 %v499, 96
    %v501 = vpop.permute.xlu0 %500
    %v502 = vrot.slane %v394, 2
    %v504 = vsel %vm306, %v393, %v469
    %v506 = vsel %vm306, %v394, %v471
    %v508 = vsel %vm438, %v504, %v477
    %v510 = vsel %vm438, %v506, %v479
    %v512 = vsel %vm441, %v508, %v483
    %v514 = vsel %vm441, %v510, %v485
    %v517 = vsel %vm306, %v486, %v491
    %v519 = vsel %vm306, %v486, %v493
    %v521 = vsel %vm438, %v517, %v498
    %v522 = vsel %vm438, %v519, %v498
    %v524 = vsel %vm441, %v521, %v501
    %v525 = vsel %vm441, %v522, %v501
    %vm526 = vsmask.f32 6400
    %v527 = vshrl.u32 %v512, 16
    %v529 = vrot.slane %v527, 1
    %v530 = vshll.u32 %v512, 16
    %v532 = vrot.slane %v530, 2
    %v533 = vor.u32 %v529, %v532
    %v534 = vshrl.u32 %v514, 16
    %v536 = vrot.slane %v534, 1
    %v537 = vshll.u32 %v514, 16
    %v539 = vrot.slane %v537, 2
    %v540 = vor.u32 %v536, %v539
    %v541 = vsel %vm526, %v533, %v540
    %v542 = vshrl.u32 %v524, 16
    %v544 = vrot.slane %v542, 1
    %v545 = vshll.u32 %v524, 16
    %v547 = vrot.slane %v545, 2
    %v548 = vor.u32 %v544, %v547
    %v549 = vshrl.u32 %v525, 16
    %v551 = vrot.slane %v549, 1
    %v552 = vshll.u32 %v525, 16
    %v554 = vrot.slane %v552, 2
    %v555 = vor.u32 %v551, %v554
    %v556 = vsel %vm526, %v548, %v555
    %v558 = vshrl.u32 %v502, 16
    %v560 = vrot.slane %v558, 1
    %v561 = vshll.u32 %v502, 16
    %v563 = vrot.slane %v561, 2
    %v564 = vor.u32 %v560, %v563
    %v565 = vsel %vm526, %v564, %v564
    %vm571 = vcmask 1045504
    %vm572 = vsmask.f32 5376
    %vm573 = vmand %vm571, %vm572
    %v574 = vsel %vm573, %v443, %v541
    %v575 = vsel %vm573, %v451, %v556
    %v576 = vsel %vm573, %v434, %v565
    %v577 = vlaneseq
    %v578 = vshrl.u32 %v577, 7
    %v579 = vsub.s32 0, %v578
    %v580 = vrot.slane %v121, %v579
    %v617 = vunpack.c.l.b16 %v20
    %v618 = vunpack.c.l.b16 %v21
    %v619 = vunpack.c.l.b16 %v22
    %v620 = vunpack.c.l.b16 %v23
    %v621 = vunpack.c.l.b16 %v24
    %v622 = vunpack.c.l.b16 %v25
    %v623 = vunpack.c.l.b16 %v26
    %v624 = vunpack.c.l.b16 %v27
    %v625 = vunpack.c.l.b16 %v28
    %v626 = vunpack.c.l.b16 %v29
    %v627 = vunpack.c.l.b16 %v30
    %v628 = vunpack.c.l.b16 %v31
    %v629 = vunpack.c.l.b16 %v32
    %v630 = vunpack.c.l.b16 %v33
    %v631 = vunpack.c.l.b16 %v34
    %v632 = vunpack.c.l.b16 %v35
    %v633 = vunpack.c.l.b16 %v36
    %v634 = vunpack.c.l.b16 %v37
    %v635 = vunpack.c.l.b16 %v38
    %v636 = vunpack.c.l.b16 %v39
    %v637 = vunpack.c.l.b16 %v40
    %v638 = vunpack.c.l.b16 %v41
    %v639 = vunpack.c.l.b16 %v42
    %v640 = vunpack.c.l.b16 %v43
    %v641 = vunpack.c.l.b16 %v44
    %v642 = vunpack.c.l.b16 %v45
    %v643 = vunpack.c.l.b16 %v46
    %v644 = vunpack.c.l.b16 %v47
    %v645 = vunpack.c.l.b16 %v48
    %v646 = vunpack.c.l.b16 %v49
    %v647 = vunpack.c.l.b16 %v50
    %v648 = vunpack.c.l.b16 %v51
    %v649 = vunpack.c.l.b16 %v52
    %v650 = vunpack.c.l.b16 %v53
    %v651 = vunpack.c.l.b16 %v54
    %v652 = vunpack.c.l.b16 %v55
    %v653 = vpack.c.b16 %v618, %v617
    %v654 = vpack.c.b16 %v620, %v619
    %v655 = vpack.c.b16 %v622, %v621
    %v656 = vpack.c.b16 %v624, %v623
    %v657 = vpack.c.b16 %v626, %v625
    %v658 = vpack.c.b16 %v628, %v627
    %v659 = vpack.c.b16 %v630, %v629
    %v660 = vpack.c.b16 %v632, %v631
    %v661 = vpack.c.b16 %v634, %v633
    %v662 = vpack.c.b16 %v636, %v635
    %v663 = vpack.c.b16 %v638, %v637
    %v664 = vpack.c.b16 %v640, %v639
    %v665 = vpack.c.b16 %v642, %v641
    %v666 = vpack.c.b16 %v644, %v643
    %v667 = vpack.c.b16 %v646, %v645
    %v668 = vpack.c.b16 %v648, %v647
    %v669 = vpack.c.b16 %v650, %v649
    %v670 = vpack.c.b16 %v652, %v651
    %v690 = vsel %vm306, %v576, 0
    %v693 = vsel %vm306, %v564, 0
    %695 = vmatprep.subr.bf16.mxu0 0
    %696 = vmatpush1.bf16.msra.mxu0 %v653
    %697 = vmatprep.subr.bf16.mxu0 0
    %698 = vmatpush1.bf16.msra.mxu0 %v654
    %699 = vmatprep.subr.bf16.mxu0 0
    %700 = vmatpush1.bf16.msra.mxu0 %v655
    %701 = vmatprep.subr.bf16.mxu0 0
    %702 = vmatpush1.bf16.msra.mxu0 %v656
    %703 = vmatprep.subr.bf16.mxu0 0
    %704 = vmatpush1.bf16.msra.mxu0 %v657
    %705 = vmatprep.subr.bf16.mxu0 0
    %706 = vmatpush1.bf16.msra.mxu0 %v658
    %707 = vmatprep.subr.bf16.mxu0 0
    %708 = vmatpush1.bf16.msra.mxu0 %v659
    %709 = vmatprep.subr.bf16.mxu0 0
    %710 = vmatpush1.bf16.msra.mxu0 %v660
    %711 = vmatprep.subr.bf16.mxu0 0
    %712 = vmatpush1.bf16.msra.mxu0 %v661
    %713 = vmatprep.subr.bf16.mxu0 0
    %714 = vmatpush1.bf16.msra.mxu0 %v662
    %715 = vmatprep.subr.bf16.mxu0 0
    %716 = vmatpush1.bf16.msra.mxu0 %v663
    %717 = vmatprep.subr.bf16.mxu0 0
    %718 = vmatpush1.bf16.msra.mxu0 %v664
    %719 = vmatprep.subr.bf16.mxu0 0
    %720 = vmatpush1.bf16.msra.mxu0 %v665
    %721 = vmatprep.subr.bf16.mxu0 0
    %722 = vmatpush1.bf16.msra.mxu0 %v666
    %723 = vmatprep.subr.bf16.mxu0 0
    %724 = vmatpush1.bf16.msra.mxu0 %v667
    %725 = vmatprep.subr.bf16.mxu0 0
    %726 = vmatpush1.bf16.msra.mxu0 %v668
    %727 = vmatprep.mubr.bf16.mxu0 %v575
    %728 = vmatmul.mubr.bf16.gmra.mrb[0].mxu0 %v574
    %v729 = vpop.f32.mrb[0].mxu0
    %v730 = vadd.f32 %v580, %v729
    %v731 = vpop.f32.mrb[0].mxu0
    %v732 = vpop.f32.mrb[0].mxu0
    %v733 = vadd.f32 %v580, %v732
    %v734 = vpop.f32.mrb[0].mxu0
    %735 = vmatprep.mubr.bf16.mxu0 %v555
    %736 = vmatmul.mubr.bf16.gmra.mrb[0].mxu0 %v540
    %v737 = vpop.f32.mrb[0].mxu0
    %v738 = vadd.f32 %v580, %v737
    %v739 = vpop.f32.mrb[0].mxu0
    %v740 = vpop.f32.mrb[0].mxu0
    %v741 = vpop.f32.mrb[0].mxu0
    %742 = vdwg.mxu0
    %743 = vmatprep.subr.bf16.mxu0 0
    %744 = vmatpush1.bf16.msra.mxu0 %v669
    %745 = vmatprep.subr.bf16.mxu0 0
    %746 = vmatpush1.bf16.msra.mxu0 %v670
    %747 = vmatprep.subr.bf16.mxu0 0
    %748 = vmatpush1.bf16.msra.mxu0 0
    %749 = vmatprep.subr.bf16.mxu0 0
    %750 = vmatpush1.bf16.msra.mxu0 0
    %751 = vmatprep.subr.bf16.mxu0 0
    %752 = vmatpush1.bf16.msra.mxu0 0
    %753 = vmatprep.subr.bf16.mxu0 0
    %754 = vmatpush1.bf16.msra.mxu0 0
    %755 = vmatprep.subr.bf16.mxu0 0
    %756 = vmatpush1.bf16.msra.mxu0 0
    %757 = vmatprep.subr.bf16.mxu0 0
    %758 = vmatpush1.bf16.msra.mxu0 0
    %759 = vmatprep.subr.bf16.mxu0 0
    %760 = vmatpush1.bf16.msra.mxu0 0
    %761 = vmatprep.subr.bf16.mxu0 0
    %762 = vmatpush1.bf16.msra.mxu0 0
    %763 = vmatprep.subr.bf16.mxu0 0
    %764 = vmatpush1.bf16.msra.mxu0 0
    %765 = vmatprep.subr.bf16.mxu0 0
    %766 = vmatpush1.bf16.msra.mxu0 0
    %767 = vmatprep.subr.bf16.mxu0 0
    %768 = vmatpush1.bf16.msra.mxu0 0
    %769 = vmatprep.subr.bf16.mxu0 0
    %770 = vmatpush1.bf16.msra.mxu0 0
    %771 = vmatprep.subr.bf16.mxu0 0
    %772 = vmatpush1.bf16.msra.mxu0 0
    %773 = vmatprep.subr.bf16.mxu0 0
    %774 = vmatpush1.bf16.msra.mxu0 0
    %775 = vmatprep.mubr.bf16.mxu0 0
    %776 = vmatmul.mubr.bf16.gmra.mrb[0].mxu0 %v690
    %v777 = vpop.f32.mrb[0].mxu0
    %v778 = vadd.f32 %v730, %v777
    %v779 = vpop.f32.mrb[0].mxu0
    %v780 = vpop.f32.mrb[0].mxu0
    %v781 = vadd.f32 %v733, %v780
    %v782 = vpop.f32.mrb[0].mxu0
    %783 = vmatprep.mubr.bf16.mxu0 0
    %784 = vmatmul.mubr.bf16.gmra.mrb[0].mxu0 %v693
    %v785 = vpop.f32.mrb[0].mxu0
    %v786 = vadd.f32 %v738, %v785
    %v787 = vpop.f32.mrb[0].mxu0
    %v788 = vpop.f32.mrb[0].mxu0
    %v789 = vpop.f32.mrb[0].mxu0
    %790 = vdwg.mxu0
    %v791 = vmax.f32 %v778, 0.0
    %v792 = vmax.f32 %v781, 0.0
    %v793 = vmax.f32 %v786, 0.0
    %v794 = vpack.c.bf16 %v792, %v791
    %v795 = vpack.c.bf16 %v793, %v793
    %v797 = vshrl.u32 %v794, 16
    %v799 = vshll.u32 %v794, 16
    %v801 = vrot.slane %v799, 1
    %v802 = vor.u32 %v797, %v801
    %803 = vrot.lane.b32.xlu0 %v802, 32
    %v804 = vpop.permute.xlu0 %803
    %v806 = vrot.slane %v794, 1
    %807 = vrot.lane.b32.xlu0 %v806, 64
    %v808 = vpop.permute.xlu0 %807
    %v809 = vrot.slane %v797, 1
    %v810 = vrot.slane %v799, 2
    %v811 = vor.u32 %v809, %v810
    %812 = vrot.lane.b32.xlu0 %v811, 96
    %v813 = vpop.permute.xlu0 %812
    %v814 = vrot.slane %v794, 2
    %v817 = vsel %vm306, %v794, %v804
    %v819 = vsel %vm438, %v817, %v808
    %v821 = vsel %vm441, %v819, %v813
    %v824 = vshll.u32 %v795, 16
    %v826 = vrot.slane %v824, 1
    %v827 = vsel %vm472, %v802, %v826
    %v828 = vshrl.u32 %v795, 16
    %v830 = vor.u32 %v828, %v826
    %831 = vrot.lane.b32.xlu0 %v827, 32
    %v832 = vpop.permute.xlu0 %831
    %833 = vrot.lane.b32.xlu0 %v830, 32
    %v834 = vpop.permute.xlu0 %833
    %vm836 = vcmask 1046528
    %v837 = vrot.slane %v795, 1
    %v838 = vsel %vm836, %v806, %v837
    %839 = vrot.lane.b32.xlu0 %v838, 64
    %v840 = vpop.permute.xlu0 %839
    %841 = vrot.lane.b32.xlu0 %v837, 64
    %v842 = vpop.permute.xlu0 %841
    %v843 = vrot.slane %v828, 1
    %v844 = vrot.slane %v824, 2
    %v845 = vor.u32 %v843, %v844
    %v846 = vsel %vm526, %v811, %v845
    %847 = vrot.lane.b32.xlu0 %v846, 96
    %v848 = vpop.permute.xlu0 %847
    %849 = vrot.lane.b32.xlu0 %v845, 96
    %v850 = vpop.permute.xlu0 %849
    %v851 = vrot.slane %v795, 2
    %v852 = vsel %vm571, %v814, %v851
    %v854 = vsel %vm306, %v794, %v832
    %v856 = vsel %vm306, %v795, %v834
    %v858 = vsel %vm438, %v854, %v840
    %v860 = vsel %vm438, %v856, %v842
    %v862 = vsel %vm441, %v858, %v848
    %v864 = vsel %vm441, %v860, %v850
    %v867 = vrot.slane %v862, 2
    %v868 = vrot.slane %v864, 2
    %v869 = vsel %vm571, %v867, %v868
    %v870 = vrot.slane %v852, 2
    %v871 = vrot.slane %v851, 2
    %v872 = vsel %vm571, %v870, %v871
    %vm875 = vcmask 1043456
    %vm876 = vsmask.f32 3328
    %vm877 = vmand %vm875, %vm876
    %v878 = vsel %vm877, %v821, %v869
    %v879 = vsel %vm877, %v814, %v872
    %v880 = vlaneseq
    %v881 = vshrl.u32 %v880, 7
    %v882 = vsub.s32 0, %v881
    %v883 = vrot.slane %v122, %v882
    %v904 = vunpack.c.l.b16 %v56
    %v905 = vunpack.c.l.b16 %v57
    %v906 = vunpack.c.l.b16 %v58
    %v907 = vunpack.c.l.b16 %v59
    %v908 = vunpack.c.l.b16 %v60
    %v909 = vunpack.c.l.b16 %v61
    %v910 = vunpack.c.l.b16 %v62
    %v911 = vunpack.c.l.b16 %v63
    %v912 = vunpack.c.l.b16 %v64
    %v913 = vunpack.c.l.b16 %v65
    %v914 = vunpack.c.l.b16 %v66
    %v915 = vunpack.c.l.b16 %v67
    %v916 = vunpack.c.l.b16 %v68
    %v917 = vunpack.c.l.b16 %v69
    %v918 = vunpack.c.l.b16 %v70
    %v919 = vunpack.c.l.b16 %v71
    %v920 = vunpack.c.l.b16 %v72
    %v921 = vunpack.c.l.b16 %v73
    %v922 = vunpack.c.l.b16 %v74
    %v923 = vunpack.c.l.b16 %v75
    %v924 = vpack.c.b16 %v905, %v904
    %v925 = vpack.c.b16 %v907, %v906
    %v926 = vpack.c.b16 %v909, %v908
    %v927 = vpack.c.b16 %v911, %v910
    %v928 = vpack.c.b16 %v913, %v912
    %v929 = vpack.c.b16 %v915, %v914
    %v930 = vpack.c.b16 %v917, %v916
    %v931 = vpack.c.b16 %v919, %v918
    %v932 = vpack.c.b16 %v921, %v920
    %v933 = vpack.c.b16 %v923, %v922
    %v945 = vsel %vm306, %v879, 0
    %947 = vmatprep.subr.bf16.mxu0 0
    %948 = vmatpush1.bf16.msra.mxu0 %v924
    %949 = vmatprep.subr.bf16.mxu0 0
    %950 = vmatpush1.bf16.msra.mxu0 %v925
    %951 = vmatprep.subr.bf16.mxu0 0
    %952 = vmatpush1.bf16.msra.mxu0 %v926
    %953 = vmatprep.subr.bf16.mxu0 0
    %954 = vmatpush1.bf16.msra.mxu0 %v927
    %955 = vmatprep.subr.bf16.mxu0 0
    %956 = vmatpush1.bf16.msra.mxu0 %v928
    %957 = vmatprep.subr.bf16.mxu0 0
    %958 = vmatpush1.bf16.msra.mxu0 %v929
    %959 = vmatprep.subr.bf16.mxu0 0
    %960 = vmatpush1.bf16.msra.mxu0 %v930
    %961 = vmatprep.subr.bf16.mxu0 0
    %962 = vmatpush1.bf16.msra.mxu0 %v931
    %963 = vmatprep.subr.bf16.mxu0 0
    %964 = vmatpush1.bf16.msra.mxu0 %v932
    %965 = vmatprep.subr.bf16.mxu0 0
    %966 = vmatpush1.bf16.msra.mxu0 %v933
    %967 = vmatprep.subr.bf16.mxu0 0
    %968 = vmatpush1.bf16.msra.mxu0 0
    %969 = vmatprep.subr.bf16.mxu0 0
    %970 = vmatpush1.bf16.msra.mxu0 0
    %971 = vmatprep.subr.bf16.mxu0 0
    %972 = vmatpush1.bf16.msra.mxu0 0
    %973 = vmatprep.subr.bf16.mxu0 0
    %974 = vmatpush1.bf16.msra.mxu0 0
    %975 = vmatprep.subr.bf16.mxu0 0
    %976 = vmatpush1.bf16.msra.mxu0 0
    %977 = vmatprep.subr.bf16.mxu0 0
    %978 = vmatpush1.bf16.msra.mxu0 0
    %979 = vmatprep.mubr.bf16.mxu0 %v945
    %980 = vmatmul.mubr.bf16.gmra.mrb[0].mxu0 %v878
    %v981 = vpop.f32.mrb[0].mxu0
    %v982 = vadd.f32 %v883, %v981
    %v983 = vpop.f32.mrb[0].mxu0
    %v984 = vpop.f32.mrb[0].mxu0
    %v985 = vadd.f32 %v883, %v984
    %v986 = vpop.f32.mrb[0].mxu0
    %987 = vdwg.mxu0
    %v988 = vmax.f32 %v982, 0.0
    %v989 = vmax.f32 %v985, 0.0
    %v990 = vpack.c.bf16 %v989, %v988
    %v992 = vshrl.u32 %v990, 16
    %v994 = vshll.u32 %v990, 16
    %v996 = vrot.slane %v994, 1
    %v997 = vor.u32 %v992, %v996
    %998 = vrot.lane.b32.xlu0 %v997, 32
    %v999 = vpop.permute.xlu0 %998
    %v1001 = vrot.slane %v990, 1
    %1002 = vrot.lane.b32.xlu0 %v1001, 64
    %v1003 = vpop.permute.xlu0 %1002
    %v1004 = vrot.slane %v992, 1
    %v1005 = vrot.slane %v994, 2
    %v1006 = vor.u32 %v1004, %v1005
    %1007 = vrot.lane.b32.xlu0 %v1006, 96
    %v1008 = vpop.permute.xlu0 %1007
    %v1009 = vrot.slane %v990, 2
    %v1012 = vsel %vm306, %v990, %v999
    %v1014 = vsel %vm438, %v1012, %v1003
    %v1016 = vsel %vm441, %v1014, %v1008
    %v1019 = vrot.slane %v1016, 2
    %v1020 = vrot.slane %v1009, 2
    %vm1023 = vcmask 1041408
    %vm1024 = vsmask.f32 1280
    %vm1025 = vmand %vm1023, %vm1024
    %v1026 = vsel %vm1025, %v1016, %v1019
    %v1027 = vsel %vm1025, %v1009, %v1020
    %v1028 = vlaneseq
    %v1029 = vshrl.u32 %v1028, 7
    %v1030 = vsub.s32 0, %v1029
    %v1031 = vrot.slane %v123, %v1030
    %v1052 = vunpack.c.l.b16 %v76
    %v1053 = vunpack.c.l.b16 %v77
    %v1054 = vunpack.c.l.b16 %v78
    %v1055 = vunpack.c.l.b16 %v79
    %v1056 = vunpack.c.l.b16 %v80
    %v1057 = vunpack.c.l.b16 %v81
    %v1058 = vunpack.c.l.b16 %v82
    %v1059 = vunpack.c.l.b16 %v83
    %v1060 = vunpack.c.l.b16 %v84
    %v1061 = vunpack.c.l.b16 %v85
    %v1062 = vunpack.c.l.b16 %v86
    %v1063 = vunpack.c.l.b16 %v87
    %v1064 = vunpack.c.l.b16 %v88
    %v1065 = vunpack.c.l.b16 %v89
    %v1066 = vunpack.c.l.b16 %v90
    %v1067 = vunpack.c.l.b16 %v91
    %v1068 = vunpack.c.l.b16 %v92
    %v1069 = vunpack.c.l.b16 %v93
    %v1070 = vunpack.c.l.b16 %v94
    %v1071 = vunpack.c.l.b16 %v95
    %v1072 = vpack.c.b16 %v1053, %v1052
    %v1073 = vpack.c.b16 %v1055, %v1054
    %v1074 = vpack.c.b16 %v1057, %v1056
    %v1075 = vpack.c.b16 %v1059, %v1058
    %v1076 = vpack.c.b16 %v1061, %v1060
    %v1077 = vpack.c.b16 %v1063, %v1062
    %v1078 = vpack.c.b16 %v1065, %v1064
    %v1079 = vpack.c.b16 %v1067, %v1066
    %v1080 = vpack.c.b16 %v1069, %v1068
    %v1081 = vpack.c.b16 %v1071, %v1070
    %v1093 = vsel %vm306, %v1027, 0
    %1095 = vmatprep.subr.bf16.mxu0 0
    %1096 = vmatpush1.bf16.msra.mxu0 %v1072
    %1097 = vmatprep.subr.bf16.mxu0 0
    %1098 = vmatpush1.bf16.msra.mxu0 %v1073
    %1099 = vmatprep.subr.bf16.mxu0 0
    %1100 = vmatpush1.bf16.msra.mxu0 %v1074
    %1101 = vmatprep.subr.bf16.mxu0 0
    %1102 = vmatpush1.bf16.msra.mxu0 %v1075
    %1103 = vmatprep.subr.bf16.mxu0 0
    %1104 = vmatpush1.bf16.msra.mxu0 %v1076
    %1105 = vmatprep.subr.bf16.mxu0 0
    %1106 = vmatpush1.bf16.msra.mxu0 %v1077
    %1107 = vmatprep.subr.bf16.mxu0 0
    %1108 = vmatpush1.bf16.msra.mxu0 %v1078
    %1109 = vmatprep.subr.bf16.mxu0 0
    %1110 = vmatpush1.bf16.msra.mxu0 %v1079
    %1111 = vmatprep.subr.bf16.mxu0 0
    %1112 = vmatpush1.bf16.msra.mxu0 %v1080
    %1113 = vmatprep.subr.bf16.mxu0 0
    %1114 = vmatpush1.bf16.msra.mxu0 %v1081
    %1115 = vmatprep.subr.bf16.mxu0 0
    %1116 = vmatpush1.bf16.msra.mxu0 0
    %1117 = vmatprep.subr.bf16.mxu0 0
    %1118 = vmatpush1.bf16.msra.mxu0 0
    %1119 = vmatprep.subr.bf16.mxu0 0
    %1120 = vmatpush1.bf16.msra.mxu0 0
    %1121 = vmatprep.subr.bf16.mxu0 0
    %1122 = vmatpush1.bf16.msra.mxu0 0
    %1123 = vmatprep.subr.bf16.mxu0 0
    %1124 = vmatpush1.bf16.msra.mxu0 0
    %1125 = vmatprep.subr.bf16.mxu0 0
    %1126 = vmatpush1.bf16.msra.mxu0 0
    %1127 = vmatprep.mubr.bf16.mxu0 %v1093
    %1128 = vmatmul.mubr.bf16.gmra.mrb[0].mxu0 %v1026
    %v1129 = vpop.f32.mrb[0].mxu0
    %v1130 = vadd.f32 %v1031, %v1129
    %v1131 = vpop.f32.mrb[0].mxu0
    %v1132 = vpop.f32.mrb[0].mxu0
    %v1133 = vpop.f32.mrb[0].mxu0
    %1134 = vdwg.mxu0
    %v1135 = vmax.f32 %v1130, 0.0
    %v1136 = vpack.c.bf16 %v1135, %v1135
    %v1138 = vshrl.u32 %v1136, 16
    %1140 = vrot.lane.b32.xlu0 %v1138, 32
    %v1141 = vpop.permute.xlu0 %1140
    %v1143 = vrot.slane %v1136, 1
    %1144 = vrot.lane.b32.xlu0 %v1143, 64
    %v1145 = vpop.permute.xlu0 %1144
    %v1147 = vsel %vm306, %v1136, %v1141
    %v1149 = vsel %vm438, %v1147, %v1145
    %v1151 = vshll.u32 %v1136, 16
    %v1153 = vrot.slane %v1151, 1
    %1154 = vrot.lane.b32.xlu0 %v1153, 32
    %v1155 = vpop.permute.xlu0 %1154
    %v1157 = vsel %vm306, %v1136, %v1155
    %v1158 = vsel %vm438, %v1157, %v1145
    %v1160 = vrot.slane %v1158, 1
    %vm1162 = vcmask 1040384
    %vm1163 = vmand %vm1162, %vm396
    %v1164 = vsel %vm1163, %v1149, %v1160
    %v1165 = vlaneseq
    %v1166 = vshrl.u32 %v1165, 7
    %v1167 = vsub.s32 0, %v1166
    %v1168 = vrot.slane %v124, %v1167
    %v1170 = vsel %vm441, %v1164, 0
    %1172 = vmatprep.subr.bf16.mxu0 0
    %1173 = vmatpush1.bf16.msra.mxu0 %v113
    %1174 = vmatprep.subr.bf16.mxu0 0
    %1175 = vmatpush1.bf16.msra.mxu0 %v114
    %1176 = vmatprep.subr.bf16.mxu0 0
    %1177 = vmatpush1.bf16.msra.mxu0 %v115
    %1178 = vmatprep.subr.bf16.mxu0 0
    %1179 = vmatpush1.bf16.msra.mxu0 %v116
    %1180 = vmatprep.subr.bf16.mxu0 0
    %1181 = vmatpush1.bf16.msra.mxu0 %v117
    %1182 = vmatprep.subr.bf16.mxu0 0
    %1183 = vmatpush1.bf16.msra.mxu0 %v118
    %1184 = vmatprep.subr.bf16.mxu0 0
    %1185 = vmatpush1.bf16.msra.mxu0 0
    %1186 = vmatprep.subr.bf16.mxu0 0
    %1187 = vmatpush1.bf16.msra.mxu0 0
    %1188 = vmatprep.subr.bf16.mxu0 0
    %1189 = vmatpush1.bf16.msra.mxu0 0
    %1190 = vmatprep.subr.bf16.mxu0 0
    %1191 = vmatpush1.bf16.msra.mxu0 0
    %1192 = vmatprep.subr.bf16.mxu0 0
    %1193 = vmatpush1.bf16.msra.mxu0 0
    %1194 = vmatprep.subr.bf16.mxu0 0
    %1195 = vmatpush1.bf16.msra.mxu0 0
    %1196 = vmatprep.subr.bf16.mxu0 0
    %1197 = vmatpush1.bf16.msra.mxu0 0
    %1198 = vmatprep.subr.bf16.mxu0 0
    %1199 = vmatpush1.bf16.msra.mxu0 0
    %1200 = vmatprep.subr.bf16.mxu0 0
    %1201 = vmatpush1.bf16.msra.mxu0 0
    %1202 = vmatprep.subr.bf16.mxu0 0
    %1203 = vmatpush1.bf16.msra.mxu0 0
    %1204 = vmatprep.mubr.bf16.mxu0 0
    %1205 = vmatmul.mubr.bf16.gmra.mrb[0].mxu0 %v1170
    %v1206 = vpop.f32.mrb[0].mxu0
    %v1207 = vadd.f32 %v1168, %v1206
    %v1208 = vpop.f32.mrb[0].mxu0
    %v1209 = vpop.f32.mrb[0].mxu0
    %v1210 = vpop.f32.mrb[0].mxu0
    %1211 = vdwg.mxu0
    %1212 = vst [vmem:[#allocation2] sm:$0x3] %v1207
    // Predicated region
    $region14: #{proprio_adapt_tconv.1} parent=1 // pred_check
      _
    $region15: #{proprio_adapt_tconv.1} parent=1 // pred_check_branch
      %1214 = sbr.rel (0) target = $region17
    $region16: #{proprio_adapt_tconv.1} parent=1 // pred_region
      %s1216 = ssub.s32 32, 32
      %1217 = vsyncadd [#allocation3], %s1216
      %s1219 = sshll.u32 [#allocation2], 4
      %s1220 = int_to_ptr.vmem [resolvable:$true] %s1219
      %1222 = dma.vmem_to_hbm [thread:$0]  %s1220, 32, %s3, [#allocation3]
    $region17: #{proprio_adapt_tconv.1} parent=1 // pred_fallthru
      _
    // Predicated region
    $region18: #{proprio_adapt_tconv.1} parent=1 // pred_check
      _
    $region19: #{proprio_adapt_tconv.1} parent=1 // pred_check_branch
      %1224 = sbr.rel (0) target = $region21
    $region20: #{proprio_adapt_tconv.1} parent=1 // pred_region
      %1225 = dma.done [#allocation3], 32
    $region21: #{proprio_adapt_tconv.1} parent=1 // pred_fallthru
      _
    %1226 = vsyncpa [#allocation3], 1

</llo_original>
